<compile_context>
chip_gen: v7x
topology: tpu7x:2x2x1
jax: 0.10.0
libtpu: 0.0.40
codegen_flags: <defaults>
</compile_context>

<pallas_src>
import jax
import jax.numpy as jnp
from jax import lax
from jax.experimental import pallas as pl
from jax.experimental.pallas import tpu as pltpu

EMB_DIM = 128        # embedding dim (lane-aligned)
NUM_USERS = 64
NUM_ITEMS = 96

MIN_PALLAS_BATCH = 256   # below this, pure-XLA gather+dot beats kernel launch overhead
MAX_TILE_B = 4096        # lane-dense batch tile cap (review: 2048-4096)


def _choose_tile_b(batch: int) -> int:
    """Lane-dense batch tile: multiple of 128, large enough to amortize the
    ~0.35us per-grid-step overhead, small enough that big batches keep
    grid >= 2-4 (both TensorCores busy on v7x)."""
    tile = 128
    while tile < MAX_TILE_B and batch >= 4 * tile:
        tile *= 2
    return tile


def _gamma_kernel(g_ref, u_idx_ref, i_idx_ref, o_ref):
    # g_ref:     (NU, NI) bf16   Gram matrix G[u,i] = U[u] . I[i], VMEM-resident
    # u_idx_ref: (1, 1, TILE_B) int32 user index tile
    # i_idx_ref: (1, 1, TILE_B) int32 item index tile
    # o_ref:     (1, 1, TILE_B) f32 lane-dense gamma tile
    nu, ni = g_ref.shape
    u_idx = u_idx_ref[0]                       # (1, TILE_B)
    i_idx = i_idx_ref[0]                       # (1, TILE_B)
    tb = u_idx.shape[-1]

    # One MXU matmul: tmp[u, b] = G[u, items[b]]  (bf16 operands, f32 acc).
    # One-hots of 0/1 are exact in bf16.
    i_oh = (lax.broadcasted_iota(jnp.int32, (ni, tb), 0) == i_idx).astype(g_ref.dtype)
    tmp = jnp.dot(g_ref[...], i_oh, preferred_element_type=jnp.float32)   # (NU, TILE_B) f32

    # Per-lane row select: f32 one-hot mask (VPU) + sublane reduction (XLU)
    # -> lane-dense (1, TILE_B), single unmasked store.
    u_oh = (lax.broadcasted_iota(jnp.int32, (nu, tb), 0) == u_idx).astype(jnp.float32)
    o_ref[0] = jnp.sum(u_oh * tmp, axis=0, keepdims=True)


@jax.jit
def _gamma_pallas(user_table, item_table, users, items):
    """gamma[b] = sum_d user_table[users[b], d] * item_table[items[b], d]."""
    nu, d = user_table.shape
    ni, d2 = item_table.shape
    assert d == d2

    b = users.shape[0]
    tile_b = _choose_tile_b(b)
    num_tiles = pl.cdiv(b, tile_b)
    b_pad = num_tiles * tile_b

    # Gram matrix (tiny: 64x96).  Computed in f32, cast to bf16 for the MXU.
    gram = jnp.dot(user_table.astype(jnp.float32),
                   item_table.astype(jnp.float32).T,
                   preferred_element_type=jnp.float32).astype(jnp.bfloat16)

    # Pad indices with 0 (valid row); padded lanes are sliced off afterwards.
    u_idx = jnp.zeros((b_pad,), jnp.int32).at[:b].set(users.astype(jnp.int32))
    i_idx = jnp.zeros((b_pad,), jnp.int32).at[:b].set(items.astype(jnp.int32))
    u_idx = u_idx.reshape(num_tiles, 1, tile_b)
    i_idx = i_idx.reshape(num_tiles, 1, tile_b)

    out = pl.pallas_call(
        _gamma_kernel,
        out_shape=jax.ShapeDtypeStruct((num_tiles, 1, tile_b), jnp.float32),
        grid_spec=pltpu.PrefetchScalarGridSpec(
            num_scalar_prefetch=0,
            grid=(num_tiles,),
            in_specs=[
                # Full Gram matrix, constant block index => copied to VMEM once.
                pl.BlockSpec((nu, ni), lambda t: (0, 0)),
                # Per-tile index vectors (batch on lane axis).
                pl.BlockSpec((1, 1, tile_b), lambda t: (t, 0, 0)),
                pl.BlockSpec((1, 1, tile_b), lambda t: (t, 0, 0)),
            ],
            out_specs=pl.BlockSpec((1, 1, tile_b), lambda t: (t, 0, 0)),
        ),
        compiler_params=pltpu.CompilerParams(
            dimension_semantics=("parallel",)),
    )(gram, u_idx, i_idx)

    return out.reshape(b_pad)[:b]


@jax.jit
def _gamma_xla(user_table, item_table, users, items):
    """Small-batch fallback: plain XLA gather + rowwise dot (exact f32)."""
    u = jnp.take(user_table, users.astype(jnp.int32), axis=0)
    i = jnp.take(item_table, items.astype(jnp.int32), axis=0)
    return jnp.sum(u * i, axis=1)


def pallas_forward(user_table, item_table, users, items, *, force_pallas=False):
    if (not force_pallas) and users.shape[0] < MIN_PALLAS_BATCH:
        return _gamma_xla(user_table, item_table, users, items)
    return _gamma_pallas(user_table, item_table, users, items)


class BasicModelJax:
    """JAX/Pallas port of BasicModel (forward path only)."""

    def __init__(self, num_users: int, num_items: int, emb_dim: int, key):
        ku, ki = jax.random.split(key)
        # Deterministic synthetic parameter init (normal * 0.1), stands in for
        # nn.Embedding weights that the concrete NGCF subclass would create.
        self.user_emb = jax.random.normal(ku, (num_users, emb_dim), jnp.float32) * 0.1
        self.item_emb = jax.random.normal(ki, (num_items, emb_dim), jnp.float32) * 0.1

    def computer(self):
        # TODO(synk): abstract in BasicModel; returns raw tables here.
        return self.user_emb, self.item_emb

    def forward(self, users: jax.Array, items: jax.Array, *, force_pallas=False) -> jax.Array:
        all_users, all_items = self.computer()
        return pallas_forward(all_users, all_items, users, items,
                              force_pallas=force_pallas)


if __name__ == "__main__":
    key = jax.random.PRNGKey(0)
    k_model, k_u, k_i, k_u2, k_i2 = jax.random.split(key, 5)

    model = BasicModelJax(NUM_USERS, NUM_ITEMS, EMB_DIM, k_model)

    def reference(users, items):
        u_e = jnp.take(model.user_emb, users, axis=0)
        i_e = jnp.take(model.item_emb, items, axis=0)
        return jnp.sum(u_e * i_e, axis=1)

    ok = True

    # 1) Small batch through the Pallas kernel (forced; pads 8 -> 128 lanes).
    B_small = 8
    users_s = jax.random.randint(k_u, (B_small,), 0, NUM_USERS, dtype=jnp.int32)
    items_s = jax.random.randint(k_i, (B_small,), 0, NUM_ITEMS, dtype=jnp.int32)
    gamma_s = jax.block_until_ready(model.forward(users_s, items_s, force_pallas=True))
    ok &= gamma_s.shape == (B_small,)
    ok &= bool(jnp.allclose(gamma_s, reference(users_s, items_s), atol=1e-3, rtol=1e-2))

    # 2) Small batch through the default dispatcher (pure-XLA fallback, exact).
    gamma_fb = jax.block_until_ready(model.forward(users_s, items_s))
    ok &= bool(jnp.allclose(gamma_fb, reference(users_s, items_s), atol=1e-5, rtol=1e-5))

    # 3) Larger batch through the Pallas path (tile_b=256, grid=2).
    B_big = 512
    users_b = jax.random.randint(k_u2, (B_big,), 0, NUM_USERS, dtype=jnp.int32)
    items_b = jax.random.randint(k_i2, (B_big,), 0, NUM_ITEMS, dtype=jnp.int32)
    gamma_b = jax.block_until_ready(model.forward(users_b, items_b))
    ok &= gamma_b.shape == (B_big,)
    ok &= bool(jnp.allclose(gamma_b, reference(users_b, items_b), atol=1e-3, rtol=1e-2))

    assert ok, "numerical check failed"
    print("KERNEL_OK")
</pallas_src>

<mosaic_0001>
module attributes {stable_mosaic.version = 11 : i64} {
  func.func @_gamma_kernel(%arg0: i32, %arg1: memref<64x96xbf16, #tpu.memory_space<vmem>>, %arg2: memref<1x1x128xi32, #tpu.memory_space<vmem>>, %arg3: memref<1x1x128xi32, #tpu.memory_space<vmem>>, %arg4: memref<1x1x128xf32, #tpu.memory_space<vmem>>) attributes {dimension_semantics = [#tpu.dimension_semantics<parallel>], iteration_bounds = array<i64: 1>, scalar_prefetch = 0 : i64, scratch_operands = 0 : i64, tpu.core_type = #tpu.core_type<tc>, window_params = [{pipeline_mode = #tpu.pipeline_mode<synchronous>, transform_indices = @transform_0, window_bounds = array<i64: 64, 96>}, {transform_indices = @transform_1, window_bounds = array<i64: 1, 1, 128>}, {transform_indices = @transform_2, window_bounds = array<i64: 1, 1, 128>}, {transform_indices = @transform_3, window_bounds = array<i64: 1, 1, 128>}]} {
    %c0 = arith.constant 0 : index
    %c0_0 = arith.constant 0 : index
    %c0_1 = arith.constant 0 : index
    %0 = vector.load %arg2[%c0, %c0_0, %c0_1] : memref<1x1x128xi32, #tpu.memory_space<vmem>>, vector<1x1x128xi32>
    %1 = vector.shape_cast %0 : vector<1x1x128xi32> to vector<1x128xi32>
    %c0_2 = arith.constant 0 : index
    %c0_3 = arith.constant 0 : index
    %c0_4 = arith.constant 0 : index
    %2 = vector.load %arg3[%c0_2, %c0_3, %c0_4] : memref<1x1x128xi32, #tpu.memory_space<vmem>>, vector<1x1x128xi32>
    %3 = vector.shape_cast %2 : vector<1x1x128xi32> to vector<1x128xi32>
    %4 = tpu.iota {dimensions = array<i32: 0>} : vector<96x128xi32>
    %5 = vector.broadcast %3 : vector<1x128xi32> to vector<96x128xi32>
    %6 = arith.cmpi eq, %4, %5 : vector<96x128xi32>
    %7 = arith.extui %6 : vector<96x128xi1> to vector<96x128xi32>
    %8 = arith.sitofp %7 : vector<96x128xi32> to vector<96x128xf32>
    %9 = arith.truncf %8 : vector<96x128xf32> to vector<96x128xbf16>
    %c0_5 = arith.constant 0 : index
    %c0_6 = arith.constant 0 : index
    %10 = vector.load %arg1[%c0_5, %c0_6] : memref<64x96xbf16, #tpu.memory_space<vmem>>, vector<64x96xbf16>
    %cst = arith.constant dense<0.000000e+00> : vector<64x128xf32>
    %11 = tpu.matmul %10, %9, %cst {dimension_numbers = #tpu.dot_dimension_numbers<[1], [0], [0], [1], [0, 0, 1, 1], [], []>} : vector<64x96xbf16>, vector<96x128xbf16>, vector<64x128xf32> -> vector<64x128xf32>
    %12 = tpu.iota {dimensions = array<i32: 0>} : vector<64x128xi32>
    %13 = vector.broadcast %1 : vector<1x128xi32> to vector<64x128xi32>
    %14 = arith.cmpi eq, %12, %13 : vector<64x128xi32>
    %15 = arith.extui %14 : vector<64x128xi1> to vector<64x128xi32>
    %16 = arith.sitofp %15 : vector<64x128xi32> to vector<64x128xf32>
    %17 = arith.mulf %16, %11 : vector<64x128xf32>
    %cst_7 = arith.constant dense<0.000000e+00> : vector<128xf32>
    %18 = vector.multi_reduction <add>, %17, %cst_7 [0] : vector<64x128xf32> to vector<128xf32>
    %19 = vector.shape_cast %18 : vector<128xf32> to vector<1x128xf32>
    %c0_8 = arith.constant 0 : index
    %c0_9 = arith.constant 0 : index
    %c0_10 = arith.constant 0 : index
    %20 = vector.load %arg4[%c0_8, %c0_9, %c0_10] : memref<1x1x128xf32, #tpu.memory_space<vmem>>, vector<1x1x128xf32>
    %21 = vector.shape_cast %20 : vector<1x1x128xf32> to vector<1x128xf32>
    %22 = vector.shape_cast %19 : vector<1x128xf32> to vector<1x1x128xf32>
    tpu.vector_store %arg4[%c0_8, %c0_9, %c0_10], %22 {strides = array<i32>} : memref<1x1x128xf32, #tpu.memory_space<vmem>>, vector<1x1x128xf32>,
    return
  }
  func.func @transform_0(%arg0: i32) -> (i32, i32) {
    %c0_i32 = arith.constant 0 : i32
    %c0_i32_0 = arith.constant 0 : i32
    %c0_i32_1 = arith.constant 0 : i32
    return %c0_i32, %c0_i32_0 : i32, i32
  }
  func.func @transform_1(%arg0: i32) -> (i32, i32, i32) {
    %c0_i32 = arith.constant 0 : i32
    %c0_i32_0 = arith.constant 0 : i32
    %c0_i32_1 = arith.constant 0 : i32
    return %arg0, %c0_i32, %c0_i32_0 : i32, i32, i32
  }
  func.func @transform_2(%arg0: i32) -> (i32, i32, i32) {
    %c0_i32 = arith.constant 0 : i32
    %c0_i32_0 = arith.constant 0 : i32
    %c0_i32_1 = arith.constant 0 : i32
    return %arg0, %c0_i32, %c0_i32_0 : i32, i32, i32
  }
  func.func @transform_3(%arg0: i32) -> (i32, i32, i32) {
    %c0_i32 = arith.constant 0 : i32
    %c0_i32_0 = arith.constant 0 : i32
    %c0_i32_1 = arith.constant 0 : i32
    return %arg0, %c0_i32, %c0_i32_0 : i32, i32, i32
  }
}

</mosaic_0001>

<llo_original>
// kernel: _gamma_pallas.1
$region0: #{_gamma_pallas.1}
  #allocation0 [shape = 'u32[]', space=smem, size = 0x4, offset = 0x4, fixed_abs, tag = 'smem constant byte address 0x4 - core index']
  #allocation1 [shape = 'u32[144,128]{1,0:T(1,128)}', space=vmem, size = 0x12000, scoped, tag = 'internal scratch']
  %s0 = inlined_call_operand.vmem [shape: bf16[64,96], index: 0, kind: input, shape index: {}]
  %s1 = inlined_call_operand.vmem [shape: s32[1,1,128], index: 1, kind: input, shape index: {}]
  %s2 = inlined_call_operand.vmem [shape: s32[1,1,128], index: 2, kind: input, shape index: {}]
  %s3 = inlined_call_operand.vmem [shape: f32[1,1,128], index: 3, kind: output, shape index: {}]
  %s4 = sld [smem:[#allocation0]]
  $region22: #{_gamma_pallas.1} parent=0
    _
  %s6 = ssub.s32 1, %s4
  %s7 = scalar_select 0, %s6, %s4
  // Predicated region
  $region2: #{_gamma_pallas.1} parent=0 // pred_check
    _
  $region3: #{_gamma_pallas.1} parent=0 // pred_check_branch
    %9 = sbr.rel (0) target = $region5
  $region4: #{_gamma_pallas.1} parent=0 // pred_region
    _
  $region5: #{_gamma_pallas.1} parent=0 // pred_fallthru
    _
  // Predicated region
  $region6: #{_gamma_pallas.1} parent=0 // pred_check
    _
  $region7: #{_gamma_pallas.1} parent=0 // pred_check_branch
    %11 = sbr.rel (0) target = $region9
  $region8: #{_gamma_pallas.1} parent=0 // pred_region
    _
  $region9: #{_gamma_pallas.1} parent=0 // pred_fallthru
    _
  // Predicated region
  $region10: #{_gamma_pallas.1} parent=0 // pred_check
    _
  $region11: #{_gamma_pallas.1} parent=0 // pred_check_branch
    %13 = sbr.rel (0) target = $region13
  $region12: #{_gamma_pallas.1} parent=0 // pred_region
    _
  $region13: #{_gamma_pallas.1} parent=0 // pred_fallthru
    _
  %v15 = vld [vmem:[%s1] sm:$0x1]
  %v16 = vld [vmem:[%s2] sm:$0x1]
  %v17 = vlaneseq
  %v18 = vshrl.u32 %v17, 7
  %v19 = vadd.s32 %v18, 8
  %v20 = vadd.s32 %v18, 16
  %v21 = vadd.s32 %v18, 24
  %v22 = vadd.s32 %v18, 32
  %v23 = vadd.s32 %v18, 40
  %v24 = vadd.s32 %v18, 48
  %v25 = vadd.s32 %v18, 56
  %v26 = vadd.s32 %v18, 64
  %v27 = vadd.s32 %v18, 72
  %v28 = vadd.s32 %v18, 80
  %v29 = vadd.s32 %v18, 88
  %v30 = vlaneseq
  %v31 = vshrl.u32 %v30, 7
  %v32 = vsub.s32 0, %v31
  %v33 = vrot.slane %v16, %v32
  %vm34 = vcmp.eq.s32.totalorder %v18, %v33
  %vm35 = vcmp.eq.s32.totalorder %v19, %v33
  %vm36 = vcmp.eq.s32.totalorder %v20, %v33
  %vm37 = vcmp.eq.s32.totalorder %v21, %v33
  %vm38 = vcmp.eq.s32.totalorder %v22, %v33
  %vm39 = vcmp.eq.s32.totalorder %v23, %v33
  %vm40 = vcmp.eq.s32.totalorder %v24, %v33
  %vm41 = vcmp.eq.s32.totalorder %v25, %v33
  %vm42 = vcmp.eq.s32.totalorder %v26, %v33
  %vm43 = vcmp.eq.s32.totalorder %v27, %v33
  %vm44 = vcmp.eq.s32.totalorder %v28, %v33
  %vm45 = vcmp.eq.s32.totalorder %v29, %v33
  %v46 = vsel %vm34, 1, 0
  %v47 = vsel %vm35, 1, 0
  %v48 = vsel %vm36, 1, 0
  %v49 = vsel %vm37, 1, 0
  %v50 = vsel %vm38, 1, 0
  %v51 = vsel %vm39, 1, 0
  %v52 = vsel %vm40, 1, 0
  %v53 = vsel %vm41, 1, 0
  %v54 = vsel %vm42, 1, 0
  %v55 = vsel %vm43, 1, 0
  %v56 = vsel %vm44, 1, 0
  %v57 = vsel %vm45, 1, 0
  %v58 = vcvt.s32.f32 %v46
  %v59 = vcvt.s32.f32 %v47
  %v60 = vcvt.s32.f32 %v48
  %v61 = vcvt.s32.f32 %v49
  %v62 = vcvt.s32.f32 %v50
  %v63 = vcvt.s32.f32 %v51
  %v64 = vcvt.s32.f32 %v52
  %v65 = vcvt.s32.f32 %v53
  %v66 = vcvt.s32.f32 %v54
  %v67 = vcvt.s32.f32 %v55
  %v68 = vcvt.s32.f32 %v56
  %v69 = vcvt.s32.f32 %v57
  %v70 = vpack.c.bf16 %v59, %v58
  %v71 = vpack.c.bf16 %v61, %v60
  %v72 = vpack.c.bf16 %v63, %v62
  %v73 = vpack.c.bf16 %v65, %v64
  %v74 = vpack.c.bf16 %v67, %v66
  %v75 = vpack.c.bf16 %v69, %v68
  %v76 = vld [vmem:[%s0] sm:$0xf]
  %v77 = vld [vmem:[%s0 + $0x4] sm:$0xf]
  %v78 = vld [vmem:[%s0 + $0x8] sm:$0xf]
  %v79 = vld [vmem:[%s0 + $0xc] sm:$0xf]
  %v80 = vld [vmem:[%s0 + $0x10] sm:$0xf]
  %v81 = vld [vmem:[%s0 + $0x14] sm:$0xf]
  %v82 = vld [vmem:[%s0 + $0x18] sm:$0xf]
  %v83 = vld [vmem:[%s0 + $0x1c] sm:$0xf]
  %v92 = vunpack.c.l.b16 %v76
  %v93 = vunpack.c.l.b16 %v77
  %v94 = vunpack.c.l.b16 %v78
  %v95 = vunpack.c.l.b16 %v79
  %v96 = vunpack.c.l.b16 %v80
  %v97 = vunpack.c.l.b16 %v81
  %v98 = vunpack.c.l.b16 %v82
  %v99 = vunpack.c.l.b16 %v83
  %v100 = vpack.c.b16 %v93, %v92
  %v101 = vpack.c.b16 %v95, %v94
  %v102 = vpack.c.b16 %v97, %v96
  %v103 = vpack.c.b16 %v99, %v98
  %vm104 = vcmask 785408
  %v106 = vsel %vm104, %v100, 0
  %v109 = vsel %vm104, %v101, 0
  %v112 = vsel %vm104, %v102, 0
  %v115 = vsel %vm104, %v103, 0
  %117 = vmatprep.subr.bf16.mxu0 0
  %118 = vmatpush1.bf16.msra.mxu0 %v70
  %119 = vmatprep.subr.bf16.mxu0 0
  %120 = vmatpush1.bf16.msra.mxu0 %v71
  %121 = vmatprep.subr.bf16.mxu0 0
  %122 = vmatpush1.bf16.msra.mxu0 %v72
  %123 = vmatprep.subr.bf16.mxu0 0
  %124 = vmatpush1.bf16.msra.mxu0 %v73
  %125 = vmatprep.subr.bf16.mxu0 0
  %126 = vmatpush1.bf16.msra.mxu0 %v74
  %127 = vmatprep.subr.bf16.mxu0 0
  %128 = vmatpush1.bf16.msra.mxu0 %v75
  %129 = vmatprep.subr.bf16.mxu0 0
  %130 = vmatpush1.bf16.msra.mxu0 0
  %131 = vmatprep.subr.bf16.mxu0 0
  %132 = vmatpush1.bf16.msra.mxu0 0
  %133 = vmatprep.subr.bf16.mxu0 0
  %134 = vmatpush1.bf16.msra.mxu0 0
  %135 = vmatprep.subr.bf16.mxu0 0
  %136 = vmatpush1.bf16.msra.mxu0 0
  %137 = vmatprep.subr.bf16.mxu0 0
  %138 = vmatpush1.bf16.msra.mxu0 0
  %139 = vmatprep.subr.bf16.mxu0 0
  %140 = vmatpush1.bf16.msra.mxu0 0
  %141 = vmatprep.subr.bf16.mxu0 0
  %142 = vmatpush1.bf16.msra.mxu0 0
  %143 = vmatprep.subr.bf16.mxu0 0
  %144 = vmatpush1.bf16.msra.mxu0 0
  %145 = vmatprep.subr.bf16.mxu0 0
  %146 = vmatpush1.bf16.msra.mxu0 0
  %147 = vmatprep.subr.bf16.mxu0 0
  %148 = vmatpush1.bf16.msra.mxu0 0
  %149 = vmatprep.mubr.bf16.mxu0 0
  %150 = vmatmul.mubr.bf16.gmra.mrb[0].mxu0 %v106
  %v151 = vpop.f32.mrb[0].mxu0
  %v152 = vadd.f32 0.0, %v151
  %v153 = vpop.f32.mrb[0].mxu0
  %v154 = vpop.f32.mrb[0].mxu0
  %v155 = vadd.f32 0.0, %v154
  %v156 = vpop.f32.mrb[0].mxu0
  %157 = vmatprep.mubr.bf16.mxu0 0
  %158 = vmatmul.mubr.bf16.gmra.mrb[0].mxu0 %v109
  %v159 = vpop.f32.mrb[0].mxu0
  %v160 = vadd.f32 0.0, %v159
  %v161 = vpop.f32.mrb[0].mxu0
  %v162 = vpop.f32.mrb[0].mxu0
  %v163 = vadd.f32 0.0, %v162
  %v164 = vpop.f32.mrb[0].mxu0
  %165 = vmatprep.mubr.bf16.mxu0 0
  %166 = vmatmul.mubr.bf16.gmra.mrb[0].mxu0 %v112
  %v167 = vpop.f32.mrb[0].mxu0
  %v168 = vadd.f32 0.0, %v167
  %v169 = vpop.f32.mrb[0].mxu0
  %v170 = vpop.f32.mrb[0].mxu0
  %v171 = vadd.f32 0.0, %v170
  %v172 = vpop.f32.mrb[0].mxu0
  %173 = vmatprep.mubr.bf16.mxu0 0
  %174 = vmatmul.mubr.bf16.gmra.mrb[0].mxu0 %v115
  %v175 = vpop.f32.mrb[0].mxu0
  %v176 = vadd.f32 0.0, %v175
  %v177 = vpop.f32.mrb[0].mxu0
  %v178 = vpop.f32.mrb[0].mxu0
  %v179 = vadd.f32 0.0, %v178
  %v180 = vpop.f32.mrb[0].mxu0
  %181 = vdwg.mxu0
  %v182 = vlaneseq
  %v183 = vshrl.u32 %v182, 7
  %v184 = vsub.s32 0, %v183
  %v185 = vrot.slane %v15, %v184
  %vm186 = vcmp.eq.s32.totalorder %v18, %v185
  %vm187 = vcmp.eq.s32.totalorder %v19, %v185
  %vm188 = vcmp.eq.s32.totalorder %v20, %v185
  %vm189 = vcmp.eq.s32.totalorder %v21, %v185
  %vm190 = vcmp.eq.s32.totalorder %v22, %v185
  %vm191 = vcmp.eq.s32.totalorder %v23, %v185
  %vm192 = vcmp.eq.s32.totalorder %v24, %v185
  %vm193 = vcmp.eq.s32.totalorder %v25, %v185
  %v194 = vsel %vm186, 1, 0
  %v195 = vsel %vm187, 1, 0
  %v196 = vsel %vm188, 1, 0
  %v197 = vsel %vm189, 1, 0
  %v198 = vsel %vm190, 1, 0
  %v199 = vsel %vm191, 1, 0
  %v200 = vsel %vm192, 1, 0
  %v201 = vsel %vm193, 1, 0
  %v202 = vcvt.s32.f32 %v194
  %v203 = vcvt.s32.f32 %v195
  %v204 = vcvt.s32.f32 %v196
  %v205 = vcvt.s32.f32 %v197
  %v206 = vcvt.s32.f32 %v198
  %v207 = vcvt.s32.f32 %v199
  %v208 = vcvt.s32.f32 %v200
  %v209 = vcvt.s32.f32 %v201
  %v210 = vmul.f32 %v202, %v152
  %v211 = vmul.f32 %v203, %v155
  %v212 = vmul.f32 %v204, %v160
  %v213 = vmul.f32 %v205, %v163
  %v214 = vmul.f32 %v206, %v168
  %v215 = vmul.f32 %v207, %v171
  %v216 = vmul.f32 %v208, %v176
  %v217 = vmul.f32 %v209, %v179
  %v218 = vadd.f32 %v210, %v211
  %v219 = vadd.f32 %v218, %v212
  %v220 = vadd.f32 %v219, %v213
  %v221 = vadd.f32 %v220, %v214
  %v222 = vadd.f32 %v221, %v215
  %v223 = vadd.f32 %v222, %v216
  %v224 = vadd.f32 %v223, %v217
  %v225 = vrot.slane %v224, 4
  %v226 = vadd.f32 %v224, %v225
  %v227 = vrot.slane %v226, 2
  %v228 = vadd.f32 %v226, %v227
  %v229 = vrot.slane %v228, 1
  %v230 = vadd.f32 %v228, %v229
  %231 = vst [vmem:[%s3] sm:$0x1] %v230
  // Predicated region
  $region14: #{_gamma_pallas.1} parent=0 // pred_check
    _
  $region15: #{_gamma_pallas.1} parent=0 // pred_check_branch
    %233 = sbr.rel (0) target = $region17
  $region16: #{_gamma_pallas.1} parent=0 // pred_region
    _
  $region17: #{_gamma_pallas.1} parent=0 // pred_fallthru
    _
  // Predicated region
  $region18: #{_gamma_pallas.1} parent=0 // pred_check
    _
  $region19: #{_gamma_pallas.1} parent=0 // pred_check_branch
    %235 = sbr.rel (0) target = $region21
  $region20: #{_gamma_pallas.1} parent=0 // pred_region
    _
  $region21: #{_gamma_pallas.1} parent=0 // pred_fallthru
    _

</llo_original>
